<compile_context>
chip_gen: v6e
topology: v6e:2x2x1
jax: 0.10.0
libtpu: 0.0.40
codegen_flags: <defaults>
</compile_context>

<pallas_src>
import functools
import numpy as np
import jax
import jax.numpy as jnp
from jax.experimental import pallas as pl
from jax.experimental.pallas import tpu as pltpu

DTYPE = jnp.float32
LANES = 128


def _round_up(x, m):
    return ((x + m - 1) // m) * m


def _pad_lanes(x, b_pad):
    """Zero-pad the last (lane/batch) axis of (..., B) up to b_pad."""
    b = x.shape[-1]
    if b == b_pad:
        return x
    pad = [(0, 0)] * (x.ndim - 1) + [(0, b_pad - b)]
    return jnp.pad(x, pad)


# ----------------------------------------------------------------------------- single step
def _arx_step_kernel(*refs, input_size, output_size, zero_input_delay, loading):
    """Single ARX step, mode specialized at trace time.  (features, B) layout.

    refs (in order):
      u (I,B), [y_meas (O,B) if loading], itdl (D_it,B), otdl (D_ot,B),
      iw_it (D_it,1), [iw_u (I,1) if zero_input_delay], ow (D_ot,1), b SMEM (1,)
      outputs: y (1,B), itdl' (D_it,B), otdl' (D_ot,B)
    """
    it = iter(refs)
    u_ref = next(it)
    y_meas_ref = next(it) if loading else None
    itdl_ref = next(it)
    otdl_ref = next(it)
    iw_it_ref = next(it)
    iw_u_ref = next(it) if zero_input_delay else None
    ow_ref = next(it)
    b_ref = next(it)
    y_ref = next(it)
    itdl_out_ref = next(it)
    otdl_out_ref = next(it)

    u = u_ref[...]
    itdl = itdl_ref[...]
    otdl = otdl_ref[...]

    # VPU broadcast-multiply + sublane reduce (no MXU for a tiny contraction).
    y = jnp.sum(itdl * iw_it_ref[...], axis=0, keepdims=True)
    if zero_input_delay:
        y = y + jnp.sum(u * iw_u_ref[...], axis=0, keepdims=True)
    y = y + jnp.sum(otdl * ow_ref[...], axis=0, keepdims=True)
    y = y + b_ref[0]
    y_ref[...] = y.astype(y_ref.dtype)

    # insert_tdl(itdl, u): two slice writes, no concat temporaries.
    d_it = itdl.shape[0]
    if d_it > input_size:
        itdl_out_ref[:d_it - input_size, :] = itdl[input_size:, :]
    itdl_out_ref[d_it - input_size:, :] = u

    # insert_tdl(otdl, y_meas (loading) or y_hat (prediction)).
    if loading:
        ins = y_meas_ref[...]
    else:
        # TODO(synk): prediction insertion assumes output_size == 1 (as PyTorch's view() implies).
        ins = jnp.broadcast_to(y, (output_size, y.shape[1])).astype(otdl_out_ref.dtype)
    d_ot = otdl.shape[0]
    if d_ot > output_size:
        otdl_out_ref[:d_ot - output_size, :] = otdl[output_size:, :]
    otdl_out_ref[d_ot - output_size:, :] = ins


# ----------------------------------------------------------------------------- fused rollout
def _arx_rollout_kernel(*refs, input_size, output_size, zero_input_delay, loading,
                        t_block, t_total):
    """T_BLK ARX steps per grid iteration; grid = (batch_tiles, time_blocks).

    The TDL state lives in the (VMEM-resident, constant-in-time index_map) output refs:
    loaded into vregs at the top of each block, carried through the unrolled step loop
    (no per-step VMEM stores of the state), stored back once per block, DMA'd to HBM only
    when the batch-tile changes / at the end.  u(t) (and y_meas(t) in loading mode) are
    streamed as (T_BLK, ·, B_tile) blocks; y(t) is accumulated into a (T_BLK, 1, B_tile)
    block and written back once per block.
    """
    it = iter(refs)
    u_ref = next(it)                                    # (T_BLK, I,  Bt)
    y_meas_ref = next(it) if loading else None          # (T_BLK, O,  Bt)
    itdl0_ref = next(it)                                # (D_it, Bt)  initial state
    otdl0_ref = next(it)                                # (D_ot, Bt)
    iw_it_ref = next(it)                                # (D_it, 1)
    iw_u_ref = next(it) if zero_input_delay else None   # (I, 1)
    ow_ref = next(it)                                   # (D_ot, 1)
    b_ref = next(it)                                    # (1, 1)
    y_ref = next(it)                                    # (T_BLK, 1, Bt)
    itdl_ref = next(it)                                 # (D_it, Bt) resident state / output
    otdl_ref = next(it)                                 # (D_ot, Bt)

    ti = pl.program_id(1)

    @pl.when(ti == 0)
    def _():
        itdl_ref[...] = itdl0_ref[...]
        otdl_ref[...] = otdl0_ref[...]

    d_it = itdl_ref.shape[0]
    d_ot = otdl_ref.shape[0]
    bt = itdl_ref.shape[1]

    # Hoisted lane-broadcasts of the (D, 1) weights and bias: once per grid iteration,
    # not once per step (JAX does not CSE broadcast_in_dim).
    iw_it_b = jnp.broadcast_to(iw_it_ref[...], (d_it, bt))
    iw_u_b = (jnp.broadcast_to(iw_u_ref[...], (input_size, bt))
              if zero_input_delay else None)
    ow_b = jnp.broadcast_to(ow_ref[...], (d_ot, bt))
    b_b = jnp.broadcast_to(b_ref[...], (1, bt))

    # State carried in vregs through the unrolled step loop.
    itdl = itdl_ref[...]
    otdl = otdl_ref[...]

    needs_mask = (t_total % t_block) != 0   # only the padded tail block needs masking

    for s in range(t_block):                # static unroll (T_BLK is small)
        u_s = u_ref[s]                      # (I, Bt)

        y_s = jnp.sum(itdl * iw_it_b, axis=0, keepdims=True)
        if zero_input_delay:
            y_s = y_s + jnp.sum(u_s * iw_u_b, axis=0, keepdims=True)
        y_s = y_s + jnp.sum(otdl * ow_b, axis=0, keepdims=True) + b_b   # (1, Bt)
        y_ref[s] = y_s.astype(y_ref.dtype)

        # Shifted TDLs built in vregs (no per-step stores).
        if d_it > input_size:
            itdl_new = jnp.concatenate([itdl[input_size:, :], u_s], axis=0)
        else:
            itdl_new = u_s
        if loading:
            ins = y_meas_ref[s]                                   # (O, Bt)
        else:
            # TODO(synk): prediction insertion assumes output_size == 1.
            ins = jnp.broadcast_to(y_s, (output_size, bt))
        if d_ot > output_size:
            otdl_new = jnp.concatenate([otdl[output_size:, :], ins], axis=0)
        else:
            otdl_new = ins

        if needs_mask:
            valid = (ti * t_block + s) < t_total
            itdl = jnp.where(valid, itdl_new, itdl)
            otdl = jnp.where(valid, otdl_new, otdl)
        else:
            itdl = itdl_new
            otdl = otdl_new

    itdl_ref[...] = itdl
    otdl_ref[...] = otdl


class ARXCellPallas:
    def __init__(self, input_delay_size, output_delay_size, input_size, output_size,
                 zero_input_delay=False, key=None):
        self.input_delay_size = int(input_delay_size)
        self.output_delay_size = int(output_delay_size)
        self.input_size = int(input_size)
        self.output_size = int(output_size)
        self.zero_input_delay = bool(zero_input_delay)

        self.d_it = self.input_delay_size * self.input_size
        self.d_ot = self.output_delay_size * self.output_size
        self.d_iw = self.d_it + int(self.zero_input_delay) * self.input_size

        key = jax.random.PRNGKey(0) if key is None else key
        k1, k2, k3 = jax.random.split(key, 3)
        self.iw = (0.01 * jax.random.normal(k1, (1, self.d_iw))).astype(DTYPE)
        self.ow = (0.01 * jax.random.normal(k2, (1, self.d_ot))).astype(DTYPE)
        self.b = (0.01 * jax.random.normal(k3, (1, 1))).astype(DTYPE)

        self._step_fns = {}
        self._step_t_fns = {}
        self._rollout_fns = {}

    # -------------------------------------------------------------------- single step
    def _build_step_call(self, B_pad, loading):
        d_it, d_ot = self.d_it, self.d_ot
        I, O = self.input_size, self.output_size
        zid = self.zero_input_delay

        kernel = functools.partial(_arx_step_kernel, input_size=I, output_size=O,
                                   zero_input_delay=zid, loading=loading)
        vmem = pl.BlockSpec(memory_space=pltpu.MemorySpace.VMEM)
        smem = pl.BlockSpec(memory_space=pltpu.MemorySpace.SMEM)

        n_state_off = 2 if loading else 1            # index of itdl among the inputs
        n_in = n_state_off + 2 + 1 + (1 if zid else 0) + 2
        in_specs = [vmem] * (n_in - 1) + [smem]      # bias (last arg) in SMEM

        return pl.pallas_call(
            kernel,
            out_shape=(
                jax.ShapeDtypeStruct((1, B_pad), DTYPE),
                jax.ShapeDtypeStruct((d_it, B_pad), DTYPE),
                jax.ShapeDtypeStruct((d_ot, B_pad), DTYPE),
            ),
            in_specs=in_specs,
            out_specs=(vmem, vmem, vmem),
            # write the shifted TDL state in place of the state inputs
            input_output_aliases={n_state_off: 1, n_state_off + 1: 2},
        )

    def _build_step(self, B, loading):
        d_it, d_ot = self.d_it, self.d_ot
        I, O = self.input_size, self.output_size
        zid = self.zero_input_delay
        B_pad = _round_up(max(B, 1), LANES)
        call = self._build_step_call(B_pad, loading)

        def step(u, itdl, otdl, y_meas, iw, ow, b):
            u_t = _pad_lanes(u.reshape(B, I).astype(DTYPE).T, B_pad)            # (I, Bp)
            itdl_t = _pad_lanes(itdl.reshape(B, d_it).astype(DTYPE).T, B_pad)   # (d_it, Bp)
            otdl_t = _pad_lanes(otdl.reshape(B, d_ot).astype(DTYPE).T, B_pad)   # (d_ot, Bp)
            iw_it = iw[:, :d_it].T.astype(DTYPE)                                # (d_it, 1)
            args = [u_t]
            if loading:
                args.append(_pad_lanes(y_meas.reshape(B, O).astype(DTYPE).T, B_pad))
            args += [itdl_t, otdl_t, iw_it]
            if zid:
                args.append(iw[:, d_it:].T.astype(DTYPE))                       # (I, 1)
            args += [ow.T.astype(DTYPE), b.reshape(1).astype(DTYPE)]
            y_t, itdl_new_t, otdl_new_t = call(*args)
            y = y_t[:, :B].T.reshape(-1, 1, O)
            return (y,
                    itdl_new_t[:, :B].T.reshape(B, d_it, 1),
                    otdl_new_t[:, :B].T.reshape(B, d_ot, 1))

        return jax.jit(step)

    def _build_step_t(self, B_pad, loading):
        d_it = self.d_it
        zid = self.zero_input_delay
        call = self._build_step_call(B_pad, loading)

        def step_t(u_t, itdl_t, otdl_t, y_meas_t, iw, ow, b):
            iw_it = iw[:, :d_it].T.astype(DTYPE)
            args = [u_t]
            if loading:
                args.append(y_meas_t)
            args += [itdl_t, otdl_t, iw_it]
            if zid:
                args.append(iw[:, d_it:].T.astype(DTYPE))
            args += [ow.T.astype(DTYPE), b.reshape(1).astype(DTYPE)]
            return call(*args)

        # Donate the transposed state so the pallas_call aliases land on the caller's
        # HBM buffers (true in-place state update, no per-call transposes).
        return jax.jit(step_t, donate_argnums=(1, 2))

    def forward(self, inp, itdl, otdl, output=None):
        """inp: (B, input_size); itdl: (B, D_it, 1); otdl: (B, D_ot, 1);
        output: (B, output_size) or None.  Returns (y_hat (B,1,output_size), itdl', otdl')."""
        B = itdl.shape[0]
        loading = output is not None
        if not loading:
            assert self.output_size == 1, "prediction insertion requires output_size == 1"
        key = (B, loading)
        if key not in self._step_fns:
            self._step_fns[key] = self._build_step(B, loading)
        return self._step_fns[key](inp, itdl, otdl, output, self.iw, self.ow, self.b)

    def forward_t(self, u_t, itdl_t, otdl_t, y_meas_t=None):
        """Persistent transposed, lane-dense API.  u_t: (input_size, B); itdl_t: (D_it, B);
        otdl_t: (D_ot, B); y_meas_t: (output_size, B) or None; B must be a multiple of 128.
        The state args are DONATED — the returned itdl'/otdl' reuse their HBM buffers."""
        loading = y_meas_t is not None
        if not loading:
            assert self.output_size == 1, "prediction insertion requires output_size == 1"
        B_pad = itdl_t.shape[1]
        assert B_pad % LANES == 0, "forward_t requires a lane-padded batch (multiple of 128)"
        key = (B_pad, loading)
        if key not in self._step_t_fns:
            self._step_t_fns[key] = self._build_step_t(B_pad, loading)
        return self._step_t_fns[key](u_t, itdl_t, otdl_t, y_meas_t,
                                     self.iw, self.ow, self.b)

    # -------------------------------------------------------------------- fused rollout
    def _build_rollout(self, T, B, loading, t_block, batch_tile):
        d_it, d_ot = self.d_it, self.d_ot
        I, O = self.input_size, self.output_size
        zid = self.zero_input_delay

        B_pad = _round_up(max(B, 1), LANES)
        if batch_tile is None:
            BT = B_pad                      # single lane-dense tile (best for v5e/v6e, 1 TC)
        else:
            BT = int(batch_tile)            # >=128-lane tiles; "parallel" axis -> v7x 2 TCs
            assert BT % LANES == 0 and B_pad % BT == 0
        n_bt = B_pad // BT

        # Time blocking amortizes the ~600-cycle per-grid-step pipeline overhead.
        # VMEM budget (keep well under the scoped limit; raise vmem_limit_bytes for huge
        # T_BLK * B_tile on v7x's 64 MiB): double-buffered u = 2*T_BLK*I*BT*4 B,
        # y block = 2*T_BLK*BT*4 B, plus resident state and weights.
        TB = int(t_block) if t_block is not None else min(T, 32)
        TB = max(1, min(TB, T))
        n_tb = (T + TB - 1) // TB
        T_pad = n_tb * TB

        kernel = functools.partial(_arx_rollout_kernel, input_size=I, output_size=O,
                                   zero_input_delay=zid, loading=loading,
                                   t_block=TB, t_total=T)

        def state_spec(d):
            return pl.BlockSpec((d, BT), lambda bi, ti: (0, bi))

        def wconst(shape):
            return pl.BlockSpec(shape, lambda bi, ti: (0, 0))

        in_specs = [pl.BlockSpec((TB, I, BT), lambda bi, ti: (ti, 0, bi))]     # u stream
        if loading:
            in_specs.append(pl.BlockSpec((TB, O, BT), lambda bi, ti: (ti, 0, bi)))  # y_meas
        in_specs += [state_spec(d_it), state_spec(d_ot), wconst((d_it, 1))]
        if zid:
            in_specs.append(wconst((I, 1)))
        in_specs += [wconst((d_ot, 1)), wconst((1, 1))]

        out_specs = (
            pl.BlockSpec((TB, 1, BT), lambda bi, ti: (ti, 0, bi)),   # y, lane/sublane dense
            pl.BlockSpec((d_it, BT), lambda bi, ti: (0, bi)),        # final itdl (resident)
            pl.BlockSpec((d_ot, BT), lambda bi, ti: (0, bi)),        # final otdl (resident)
        )

        itdl0_idx = 2 if loading else 1
        otdl0_idx = itdl0_idx + 1

        call = pl.pallas_call(
            kernel,
            out_shape=(
                jax.ShapeDtypeStruct((T_pad, 1, B_pad), DTYPE),
                jax.ShapeDtypeStruct((d_it, B_pad), DTYPE),
                jax.ShapeDtypeStruct((d_ot, B_pad), DTYPE),
            ),
            grid_spec=pltpu.PrefetchScalarGridSpec(
                num_scalar_prefetch=0,
                grid=(n_bt, n_tb),
                in_specs=in_specs,
                out_specs=out_specs,
            ),
            # reuse the initial-state HBM buffers for the final state
            input_output_aliases={itdl0_idx: 1, otdl0_idx: 2},
            compiler_params=pltpu.CompilerParams(
                dimension_semantics=("parallel", "arbitrary")),   # batch || , time = recurrence
        )

        def rollout(u_seq, itdl, otdl, y_meas_seq, iw, ow, b):
            u_t = jnp.transpose(u_seq.reshape(T, B, I).astype(DTYPE), (0, 2, 1))  # (T, I, B)
            u_t = _pad_lanes(u_t, B_pad)
            if T_pad != T:
                u_t = jnp.pad(u_t, ((0, T_pad - T), (0, 0), (0, 0)))
            itdl_t = _pad_lanes(itdl.reshape(B, d_it).astype(DTYPE).T, B_pad)
            otdl_t = _pad_lanes(otdl.reshape(B, d_ot).astype(DTYPE).T, B_pad)
            iw_it = iw[:, :d_it].T.astype(DTYPE)
            args = [u_t]
            if loading:
                ym = jnp.transpose(y_meas_seq.reshape(T, B, O).astype(DTYPE), (0, 2, 1))
                ym = _pad_lanes(ym, B_pad)
                if T_pad != T:
                    ym = jnp.pad(ym, ((0, T_pad - T), (0, 0), (0, 0)))
                args.append(ym)
            args += [itdl_t, otdl_t, iw_it]
            if zid:
                args.append(iw[:, d_it:].T.astype(DTYPE))
            args += [ow.T.astype(DTYPE), b.reshape(1, 1).astype(DTYPE)]
            y_t, itdl_new_t, otdl_new_t = call(*args)
            y_seq = jnp.transpose(y_t[:T, :, :B], (0, 2, 1)).reshape(T, B, 1, O)
            return (y_seq,
                    itdl_new_t[:, :B].T.reshape(B, d_it, 1),
                    otdl_new_t[:, :B].T.reshape(B, d_ot, 1))

        return jax.jit(rollout)

    def rollout(self, u_seq, itdl, otdl, y_meas_seq=None, t_block=None, batch_tile=None):
        """Fused multi-step recurrence in ONE pallas_call.
        u_seq: (T, B, input_size).  If y_meas_seq (T, B, output_size) is given, runs the
        teacher-forced "loading" rollout (measurements inserted into otdl); otherwise the
        prediction is fed back.  Returns (y_seq (T,B,1,output_size), itdl', otdl')."""
        assert self.output_size == 1, "rollout output view requires output_size == 1"
        T, B = int(u_seq.shape[0]), int(u_seq.shape[1])
        loading = y_meas_seq is not None
        key = (T, B, loading, t_block, batch_tile)
        if key not in self._rollout_fns:
            self._rollout_fns[key] = self._build_rollout(T, B, loading, t_block, batch_tile)
        return self._rollout_fns[key](u_seq, itdl, otdl, y_meas_seq,
                                      self.iw, self.ow, self.b)


# ------------------------------------------------------------------------------ reference
def _ref_forward(cell, inp, itdl, otdl, output=None):
    """Pure-numpy float64 reference mirroring the PyTorch forward."""
    B = itdl.shape[0]
    iw = np.asarray(cell.iw, np.float64)
    ow = np.asarray(cell.ow, np.float64)
    b = np.asarray(cell.b, np.float64)
    u = np.asarray(inp, np.float64).reshape(B, cell.input_size, 1)
    it = np.asarray(itdl, np.float64)
    ot = np.asarray(otdl, np.float64)
    delay = np.concatenate([it, u], axis=1) if cell.zero_input_delay else it
    a2 = np.matmul(iw, delay) + np.matmul(ow, ot) + b              # (B,1,1)
    itdl_new = np.concatenate([it[:, cell.input_size:, :], u], axis=1)
    ins = (np.asarray(output, np.float64).reshape(B, cell.output_size, 1)
           if output is not None else a2)
    otdl_new = np.concatenate([ot[:, cell.output_size:, :], ins], axis=1)
    return a2.reshape(-1, 1, cell.output_size), itdl_new, otdl_new


def _ref_rollout(cell, u_seq, itdl, otdl, y_meas_seq=None):
    it_ref, ot_ref = np.asarray(itdl, np.float64), np.asarray(otdl, np.float64)
    ys = []
    T = u_seq.shape[0]
    for t in range(T):
        out_t = None if y_meas_seq is None else np.asarray(y_meas_seq[t])
        y_t, it_ref, ot_ref = _ref_forward(cell, np.asarray(u_seq[t]), it_ref, ot_ref,
                                           output=out_t)
        ys.append(y_t)
    return np.stack(ys, axis=0), it_ref, ot_ref


if __name__ == "__main__":
    key = jax.random.PRNGKey(0)
    kp, k1, k2, k3, k4, k5, k6, k7, k8, k9 = jax.random.split(key, 10)

    B = 128                                   # batch maps to TPU lanes (lane-dense layout)
    input_delay_size, output_delay_size = 2, 3
    input_size, output_size = 4, 1            # output_size=1 (prediction insertion requires it)
    zero_input_delay = True
    T = 8                                     # rollout length

    cell = ARXCellPallas(input_delay_size, output_delay_size, input_size, output_size,
                         zero_input_delay=zero_input_delay, key=kp)
    d_it, d_ot = cell.d_it, cell.d_ot

    u = jax.random.normal(k1, (B, input_size), dtype=DTYPE)
    itdl = jax.random.normal(k2, (B, d_it, 1), dtype=DTYPE)
    otdl = jax.random.normal(k3, (B, d_ot, 1), dtype=DTYPE)
    y_meas = jax.random.normal(k4, (B, output_size), dtype=DTYPE)
    u_seq = jax.random.normal(k5, (T, B, input_size), dtype=DTYPE)
    y_meas_seq = jax.random.normal(k6, (T, B, output_size), dtype=DTYPE)

    TOL = dict(rtol=1e-5, atol=1e-5)

    # --- single-step predict-and-update (output=None) ---
    y_p, it_p, ot_p = cell.forward(u, itdl, otdl, output=None)
    jax.block_until_ready((y_p, it_p, ot_p))
    y_r, it_r, ot_r = _ref_forward(cell, u, itdl, otdl, output=None)
    np.testing.assert_allclose(np.asarray(y_p), y_r, **TOL)
    np.testing.assert_allclose(np.asarray(it_p), it_r, **TOL)
    np.testing.assert_allclose(np.asarray(ot_p), ot_r, **TOL)

    # --- single-step loading (measurement provided) ---
    y_l, it_l, ot_l = cell.forward(u, itdl, otdl, output=y_meas)
    jax.block_until_ready((y_l, it_l, ot_l))
    y_r2, it_r2, ot_r2 = _ref_forward(cell, u, itdl, otdl, output=y_meas)
    np.testing.assert_allclose(np.asarray(y_l), y_r2, **TOL)
    np.testing.assert_allclose(np.asarray(it_l), it_r2, **TOL)
    np.testing.assert_allclose(np.asarray(ot_l), ot_r2, **TOL)

    # --- persistent transposed-layout step with donated (in-place) state ---
    u_td = jnp.asarray(np.asarray(u).reshape(B, input_size).T, DTYPE)
    itdl_td = jnp.asarray(np.asarray(itdl).reshape(B, d_it).T, DTYPE)
    otdl_td = jnp.asarray(np.asarray(otdl).reshape(B, d_ot).T, DTYPE)
    y_t_, it_t_, ot_t_ = cell.forward_t(u_td, itdl_td, otdl_td)
    jax.block_until_ready((y_t_, it_t_, ot_t_))
    np.testing.assert_allclose(np.asarray(y_t_).T.reshape(B, 1, output_size), y_r, **TOL)
    np.testing.assert_allclose(np.asarray(it_t_).T.reshape(B, d_it, 1), it_r, **TOL)
    np.testing.assert_allclose(np.asarray(ot_t_).T.reshape(B, d_ot, 1), ot_r, **TOL)

    # --- fused T-step prediction rollout (single time block) ---
    y_seq, it_T, ot_T = cell.rollout(u_seq, itdl, otdl)
    jax.block_until_ready((y_seq, it_T, ot_T))
    y_sr, it_sr, ot_sr = _ref_rollout(cell, np.asarray(u_seq), itdl, otdl)
    np.testing.assert_allclose(np.asarray(y_seq), y_sr, **TOL)
    np.testing.assert_allclose(np.asarray(it_T), it_sr, **TOL)
    np.testing.assert_allclose(np.asarray(ot_T), ot_sr, **TOL)

    # --- fused loading (teacher-forced) rollout ---
    y_seq_l, it_Tl, ot_Tl = cell.rollout(u_seq, itdl, otdl, y_meas_seq=y_meas_seq)
    jax.block_until_ready((y_seq_l, it_Tl, ot_Tl))
    y_slr, it_slr, ot_slr = _ref_rollout(cell, np.asarray(u_seq), itdl, otdl,
                                         y_meas_seq=np.asarray(y_meas_seq))
    np.testing.assert_allclose(np.asarray(y_seq_l), y_slr, **TOL)
    np.testing.assert_allclose(np.asarray(it_Tl), it_slr, **TOL)
    np.testing.assert_allclose(np.asarray(ot_Tl), ot_slr, **TOL)

    # --- ragged T with a smaller time block (masked tail path) ---
    T2 = 11
    u_seq2 = jax.random.normal(k7, (T2, B, input_size), dtype=DTYPE)
    y_seq2, it_T2, ot_T2 = cell.rollout(u_seq2, itdl, otdl, t_block=4)
    jax.block_until_ready((y_seq2, it_T2, ot_T2))
    y_s2r, it_s2r, ot_s2r = _ref_rollout(cell, np.asarray(u_seq2), itdl, otdl)
    np.testing.assert_allclose(np.asarray(y_seq2), y_s2r, **TOL)
    np.testing.assert_allclose(np.asarray(it_T2), it_s2r, **TOL)
    np.testing.assert_allclose(np.asarray(ot_T2), ot_s2r, **TOL)

    # --- batch-tiled rollout (the "parallel" batch axis used for v7x megacore) ---
    B2 = 256
    u_seq3 = jax.random.normal(k8, (T, B2, input_size), dtype=DTYPE)
    itdl3 = jax.random.normal(k9, (B2, d_it, 1), dtype=DTYPE)
    otdl3 = jax.random.normal(k1, (B2, d_ot, 1), dtype=DTYPE)
    y_seq3, it_T3, ot_T3 = cell.rollout(u_seq3, itdl3, otdl3, batch_tile=128)
    jax.block_until_ready((y_seq3, it_T3, ot_T3))
    y_s3r, it_s3r, ot_s3r = _ref_rollout(cell, np.asarray(u_seq3), itdl3, otdl3)
    np.testing.assert_allclose(np.asarray(y_seq3), y_s3r, **TOL)
    np.testing.assert_allclose(np.asarray(it_T3), it_s3r, **TOL)
    np.testing.assert_allclose(np.asarray(ot_T3), ot_s3r, **TOL)

    print("KERNEL_OK")
</pallas_src>

<mosaic_0001>
module attributes {stable_mosaic.version = 11 : i64} {
  func.func @_arx_step_kernel(%arg0: memref<4x128xf32, #tpu.memory_space<vmem>>, %arg1: memref<8x128xf32, #tpu.memory_space<vmem>>, %arg2: memref<3x128xf32, #tpu.memory_space<vmem>>, %arg3: memref<8x1xf32, #tpu.memory_space<vmem>>, %arg4: memref<4x1xf32, #tpu.memory_space<vmem>>, %arg5: memref<3x1xf32, #tpu.memory_space<vmem>>, %arg6: memref<1xf32, #tpu.memory_space<smem>>, %arg7: memref<1x128xf32, #tpu.memory_space<vmem>>, %arg8: memref<8x128xf32, #tpu.memory_space<vmem>>, %arg9: memref<3x128xf32, #tpu.memory_space<vmem>>) attributes {dimension_semantics = [], scalar_prefetch = 0 : i64, scratch_operands = 0 : i64, tpu.core_type = #tpu.core_type<tc>} {
    %c0 = arith.constant 0 : index
    %c0_0 = arith.constant 0 : index
    %0 = vector.load %arg0[%c0, %c0_0] : memref<4x128xf32, #tpu.memory_space<vmem>>, vector<4x128xf32>
    %c0_1 = arith.constant 0 : index
    %c0_2 = arith.constant 0 : index
    %1 = vector.load %arg1[%c0_1, %c0_2] : memref<8x128xf32, #tpu.memory_space<vmem>>, vector<8x128xf32>
    %c0_3 = arith.constant 0 : index
    %c0_4 = arith.constant 0 : index
    %2 = vector.load %arg2[%c0_3, %c0_4] : memref<3x128xf32, #tpu.memory_space<vmem>>, vector<3x128xf32>
    %c0_5 = arith.constant 0 : index
    %c0_6 = arith.constant 0 : index
    %3 = vector.load %arg3[%c0_5, %c0_6] : memref<8x1xf32, #tpu.memory_space<vmem>>, vector<8x1xf32>
    %4 = vector.broadcast %3 : vector<8x1xf32> to vector<8x128xf32>
    %5 = arith.mulf %1, %4 : vector<8x128xf32>
    %cst = arith.constant dense<0.000000e+00> : vector<128xf32>
    %6 = vector.multi_reduction <add>, %5, %cst [0] : vector<8x128xf32> to vector<128xf32>
    %7 = vector.shape_cast %6 : vector<128xf32> to vector<1x128xf32>
    %c0_7 = arith.constant 0 : index
    %c0_8 = arith.constant 0 : index
    %8 = vector.load %arg4[%c0_7, %c0_8] : memref<4x1xf32, #tpu.memory_space<vmem>>, vector<4x1xf32>
    %9 = vector.broadcast %8 : vector<4x1xf32> to vector<4x128xf32>
    %10 = arith.mulf %0, %9 : vector<4x128xf32>
    %cst_9 = arith.constant dense<0.000000e+00> : vector<128xf32>
    %11 = vector.multi_reduction <add>, %10, %cst_9 [0] : vector<4x128xf32> to vector<128xf32>
    %12 = vector.shape_cast %11 : vector<128xf32> to vector<1x128xf32>
    %13 = arith.addf %7, %12 : vector<1x128xf32>
    %c0_10 = arith.constant 0 : index
    %c0_11 = arith.constant 0 : index
    %14 = vector.load %arg5[%c0_10, %c0_11] : memref<3x1xf32, #tpu.memory_space<vmem>>, vector<3x1xf32>
    %15 = vector.broadcast %14 : vector<3x1xf32> to vector<3x128xf32>
    %16 = arith.mulf %2, %15 : vector<3x128xf32>
    %cst_12 = arith.constant dense<0.000000e+00> : vector<128xf32>
    %17 = vector.multi_reduction <add>, %16, %cst_12 [0] : vector<3x128xf32> to vector<128xf32>
    %18 = vector.shape_cast %17 : vector<128xf32> to vector<1x128xf32>
    %19 = arith.addf %13, %18 : vector<1x128xf32>
    %c0_13 = arith.constant 0 : index
    %20 = memref.load %arg6[%c0_13] : memref<1xf32, #tpu.memory_space<smem>>
    %21 = vector.broadcast %20 : f32 to vector<1x128xf32>
    %22 = arith.addf %19, %21 : vector<1x128xf32>
    %c0_14 = arith.constant 0 : index
    %c0_15 = arith.constant 0 : index
    %23 = vector.load %arg7[%c0_14, %c0_15] : memref<1x128xf32, #tpu.memory_space<vmem>>, vector<1x128xf32>
    tpu.vector_store %arg7[%c0_14, %c0_15], %22 {strides = array<i32>} : memref<1x128xf32, #tpu.memory_space<vmem>>, vector<1x128xf32>,
    %24 = vector.extract_strided_slice %1 {offsets = [4, 0], sizes = [4, 128], strides = [1, 1]} : vector<8x128xf32> to vector<4x128xf32>
    %c0_16 = arith.constant 0 : index
    %c0_17 = arith.constant 0 : index
    %25 = vector.load %arg8[%c0_16, %c0_17] : memref<8x128xf32, #tpu.memory_space<vmem>>, vector<4x128xf32>
    tpu.vector_store %arg8[%c0_16, %c0_17], %24 {strides = array<i32>} : memref<8x128xf32, #tpu.memory_space<vmem>>, vector<4x128xf32>,
    %c4 = arith.constant 4 : index
    %c0_18 = arith.constant 0 : index
    %26 = vector.load %arg8[%c4, %c0_18] : memref<8x128xf32, #tpu.memory_space<vmem>>, vector<4x128xf32>
    tpu.vector_store %arg8[%c4, %c0_18], %0 {strides = array<i32>} : memref<8x128xf32, #tpu.memory_space<vmem>>, vector<4x128xf32>,
    %27 = vector.extract_strided_slice %2 {offsets = [1, 0], sizes = [2, 128], strides = [1, 1]} : vector<3x128xf32> to vector<2x128xf32>
    %c0_19 = arith.constant 0 : index
    %c0_20 = arith.constant 0 : index
    %28 = vector.load %arg9[%c0_19, %c0_20] : memref<3x128xf32, #tpu.memory_space<vmem>>, vector<2x128xf32>
    tpu.vector_store %arg9[%c0_19, %c0_20], %27 {strides = array<i32>} : memref<3x128xf32, #tpu.memory_space<vmem>>, vector<2x128xf32>,
    %c2 = arith.constant 2 : index
    %c0_21 = arith.constant 0 : index
    %29 = vector.load %arg9[%c2, %c0_21] : memref<3x128xf32, #tpu.memory_space<vmem>>, vector<1x128xf32>
    tpu.vector_store %arg9[%c2, %c0_21], %22 {strides = array<i32>} : memref<3x128xf32, #tpu.memory_space<vmem>>, vector<1x128xf32>,
    return
  }
}

</mosaic_0001>

<llo_original>
// kernel: step.1
$region0: #{step.1}
  #allocation0 [shape = 'u32[]', space=smem, size = 0x4, offset = 0x4, fixed_abs, tag = 'smem constant byte address 0x4 - core index']
  #allocation1 [shape = 'u32[144,128]{1,0:T(1,128)}', space=vmem, size = 0x12000, scoped, tag = 'internal scratch']
  #allocation2 [shape = 'f32[1]{0:T(128)S(6)}', space=smem, size = 0x200, scoped, tag = 'scoped memory for step.1']
  %s0 = inlined_call_operand.vmem [shape: f32[4,128], index: 0, kind: input, shape index: {}]
  %s1 = inlined_call_operand.vmem [shape: f32[8,128], index: 1, kind: input, shape index: {}, may-alias: {1,8}]
  %s2 = inlined_call_operand.vmem [shape: f32[3,128], index: 2, kind: input, shape index: {}, may-alias: {2,9}]
  %s3 = inlined_call_operand.vmem [shape: f32[8,1], index: 3, kind: input, shape index: {}]
  %s4 = inlined_call_operand.vmem [shape: f32[4,1], index: 4, kind: input, shape index: {}]
  %s5 = inlined_call_operand.vmem [shape: f32[3,1], index: 5, kind: input, shape index: {}]
  %s6 = inlined_call_operand.<no memory space> [shape: f32[1], index: 6, kind: input, shape index: {}]
  %s7 = inlined_call_operand.hbm [shape: f32[1,128], index: 7, kind: output, shape index: {0}]
  %s8 = inlined_call_operand.vmem [shape: f32[8,128], index: 8, kind: output, shape index: {1}, may-alias: {1,8}]
  %s9 = inlined_call_operand.vmem [shape: f32[3,128], index: 9, kind: output, shape index: {2}, may-alias: {2,9}]
  %10 = xla_tuple %s7, %s8, %s9
  %s11 = sld [smem:[#allocation0]]
  $region54: #{step.1} parent=0
    _
  %s13 = ssub.s32 1, %s11
  %s14 = scalar_select 0, %s13, %s11
  %15 = sst [smem:[#allocation2]] %s6
  $region1: #{step.1} parent=0
    #allocation3 [shape = 'u8[512]{0}', space=vmem, size = 0x400, scoped, tag = 'output window, operand 0, single buffered']
    #allocation4 [shape = 's32[1]{0}', space=sflag, size = 0x4, scoped, tag = 'scoped memory for step.1']
    %16 = vsyncpa [#allocation4], 0
    // Predicated region
    $region2: #{step.1} parent=1 // pred_check
      _
    $region3: #{step.1} parent=1 // pred_check_branch
      %18 = sbr.rel (0) target = $region5
    $region4: #{step.1} parent=1 // pred_region
      _
    $region5: #{step.1} parent=1 // pred_fallthru
      _
    // Predicated region
    $region6: #{step.1} parent=1 // pred_check
      _
    $region7: #{step.1} parent=1 // pred_check_branch
      %20 = sbr.rel (0) target = $region9
    $region8: #{step.1} parent=1 // pred_region
      _
    $region9: #{step.1} parent=1 // pred_fallthru
      _
    // Predicated region
    $region10: #{step.1} parent=1 // pred_check
      _
    $region11: #{step.1} parent=1 // pred_check_branch
      %22 = sbr.rel (0) target = $region13
    $region12: #{step.1} parent=1 // pred_region
      _
    $region13: #{step.1} parent=1 // pred_fallthru
      _
    // Predicated region
    $region14: #{step.1} parent=1 // pred_check
      _
    $region15: #{step.1} parent=1 // pred_check_branch
      %24 = sbr.rel (0) target = $region17
    $region16: #{step.1} parent=1 // pred_region
      _
    $region17: #{step.1} parent=1 // pred_fallthru
      _
    // Predicated region
    $region18: #{step.1} parent=1 // pred_check
      _
    $region19: #{step.1} parent=1 // pred_check_branch
      %26 = sbr.rel (0) target = $region21
    $region20: #{step.1} parent=1 // pred_region
      _
    $region21: #{step.1} parent=1 // pred_fallthru
      _
    // Predicated region
    $region22: #{step.1} parent=1 // pred_check
      _
    $region23: #{step.1} parent=1 // pred_check_branch
      %28 = sbr.rel (0) target = $region25
    $region24: #{step.1} parent=1 // pred_region
      _
    $region25: #{step.1} parent=1 // pred_fallthru
      _
    // Predicated region
    $region26: #{step.1} parent=1 // pred_check
      _
    $region27: #{step.1} parent=1 // pred_check_branch
      %30 = sbr.rel (0) target = $region29
    $region28: #{step.1} parent=1 // pred_region
      _
    $region29: #{step.1} parent=1 // pred_fallthru
      _
    %v31 = vld [vmem:[%s0] sm:$0xf]
    %v32 = vld [vmem:[%s1] sm:$0xff]
    %v33 = vld [vmem:[%s2] sm:$0x7]
    %v34 = vld [vmem:[%s3] sm:$0xff]
    %36 = vset.pattern.permute.xlu0 0
    %37 = vperm.xlu0 %36, %v34
    %v38 = vpop.permute.xlu0 %37
    %v40 = vmul.f32 %v32, %v38
    %v41 = vrot.slane %v40, 4
    %v42 = vadd.f32 %v40, %v41
    %v43 = vrot.slane %v42, 2
    %v44 = vadd.f32 %v42, %v43
    %v45 = vrot.slane %v44, 1
    %v46 = vadd.f32 %v44, %v45
    %v47 = vld [vmem:[%s4] sm:$0xf]
    %49 = vset.pattern.permute.xlu0 0
    %50 = vperm.xlu0 %49, %v47
    %v51 = vpop.permute.xlu0 %50
    %v53 = vmul.f32 %v31, %v51
    %vm54 = vcmask 1043456
    %v55 = vsel %vm54, %v53, 0.0
    %v56 = vrot.slane %v55, 4
    %v57 = vadd.f32 %v55, %v56
    %v58 = vrot.slane %v57, 2
    %v59 = vadd.f32 %v57, %v58
    %v60 = vrot.slane %v59, 1
    %v61 = vadd.f32 %v59, %v60
    %v62 = vadd.f32 %v46, %v61
    %v63 = vld [vmem:[%s5] sm:$0x7]
    %65 = vset.pattern.permute.xlu0 0
    %66 = vperm.xlu0 %65, %v63
    %v67 = vpop.permute.xlu0 %66
    %v69 = vmul.f32 %v33, %v67
    %vm70 = vcmask 1042432
    %v71 = vsel %vm70, %v69, 0.0
    %v72 = vrot.slane %v71, 4
    %v73 = vadd.f32 %v71, %v72
    %v74 = vrot.slane %v73, 2
    %v75 = vadd.f32 %v73, %v74
    %v76 = vrot.slane %v75, 1
    %v77 = vadd.f32 %v75, %v76
    %v78 = vadd.f32 %v62, %v77
    %s79 = sld [smem:[#allocation2]]
    %v80 = vstv %s79
    %v81 = vadd.f32 %v78, %v80
    %82 = vst [vmem:[#allocation3] sm:$0x1] %v81
    %83 = vst [vmem:[%s8 - $0x4] sm:$0xf0] %v32
    %84 = vst [vmem:[%s8 + $0x4] sm:$0xf] %v31
    %85 = vst [vmem:[%s9 - $0x1] sm:$0x6] %v33
    %86 = vst [vmem:[%s9 + $0x2] sm:$0x1] %v81
    // Predicated region
    $region30: #{step.1} parent=1 // pred_check
      _
    $region31: #{step.1} parent=1 // pred_check_branch
      %88 = sbr.rel (0) target = $region33
    $region32: #{step.1} parent=1 // pred_region
      %s90 = ssub.s32 16, 16
      %91 = vsyncadd [#allocation4], %s90
      %s93 = sshll.u32 [#allocation3], 4
      %s94 = int_to_ptr.vmem [resolvable:$true] %s93
      %96 = dma.vmem_to_hbm [thread:$0]  %s94, 16, %s7, [#allocation4]
    $region33: #{step.1} parent=1 // pred_fallthru
      _
    // Predicated region
    $region34: #{step.1} parent=1 // pred_check
      _
    $region35: #{step.1} parent=1 // pred_check_branch
      %98 = sbr.rel (0) target = $region37
    $region36: #{step.1} parent=1 // pred_region
      _
    $region37: #{step.1} parent=1 // pred_fallthru
      _
    // Predicated region
    $region38: #{step.1} parent=1 // pred_check
      _
    $region39: #{step.1} parent=1 // pred_check_branch
      %100 = sbr.rel (0) target = $region41
    $region40: #{step.1} parent=1 // pred_region
      _
    $region41: #{step.1} parent=1 // pred_fallthru
      _
    // Predicated region
    $region42: #{step.1} parent=1 // pred_check
      _
    $region43: #{step.1} parent=1 // pred_check_branch
      %102 = sbr.rel (0) target = $region45
    $region44: #{step.1} parent=1 // pred_region
      %103 = dma.done [#allocation4], 16
    $region45: #{step.1} parent=1 // pred_fallthru
      _
    // Predicated region
    $region46: #{step.1} parent=1 // pred_check
      _
    $region47: #{step.1} parent=1 // pred_check_branch
      %105 = sbr.rel (0) target = $region49
    $region48: #{step.1} parent=1 // pred_region
      _
    $region49: #{step.1} parent=1 // pred_fallthru
      _
    // Predicated region
    $region50: #{step.1} parent=1 // pred_check
      _
    $region51: #{step.1} parent=1 // pred_check_branch
      %107 = sbr.rel (0) target = $region53
    $region52: #{step.1} parent=1 // pred_region
      _
    $region53: #{step.1} parent=1 // pred_fallthru
      _
    %108 = vsyncpa [#allocation4], 1

</llo_original>
